<compile_context>
chip_gen: v6e
topology: v6e:2x2x1
jax: 0.10.0
libtpu: 0.0.40
codegen_flags: <defaults>
</compile_context>

<pallas_src>
import jax
import jax.numpy as jnp
from jax import lax
from jax.experimental import pallas as pl
from jax.experimental.pallas import tpu as pltpu

_LANES = 128


def _cdiv(a, b):
    return -(-a // b)


def _make_kernel(nt, inner, tile_rows, edge_rows, has_edge, has_oob):
    """Per-layer reduction kernel.

    Accumulates into a per-core (1, 3, 128) lane accumulator:
      row 0: sum (f - 1)^2     row 1: sum f^2     row 2: sum (r - 1)^2
    """

    def kernel(f_ref, r_ref, out_ref):
        j = pl.program_id(1)

        @pl.when(j == 0)
        def _init():
            out_ref[...] = jnp.zeros_like(out_ref)

        def _accum(f_g, f_sq, r_g):
            fm1 = f_g - 1.0
            rm1 = r_g - 1.0
            g_part = jnp.sum(fm1 * fm1, axis=0, keepdims=True)     # (1,128)
            f2_part = jnp.sum(f_sq * f_sq, axis=0, keepdims=True)  # (1,128)
            r_part = jnp.sum(rm1 * rm1, axis=0, keepdims=True)     # (1,128)
            upd = jnp.concatenate([g_part, f2_part, r_part], axis=0)  # (3,128)
            out_ref[...] = out_ref[...] + upd[None, :, :]

        if not (has_edge or has_oob):
            # Every tile fully valid: single unmasked fast path (~6 VPU ops/elem).
            f = f_ref[...].astype(jnp.float32)
            r = r_ref[...].astype(jnp.float32)
            _accum(f, f, r)
        else:
            t = pl.program_id(0) * inner + j            # global tile index
            n_full = nt - 1 if has_edge else nt

            @pl.when(t < n_full)
            def _interior():
                f = f_ref[...].astype(jnp.float32)
                r = r_ref[...].astype(jnp.float32)
                _accum(f, f, r)

            if has_edge:
                @pl.when(t == nt - 1)
                def _edge():
                    # Rows past `edge_rows` in the last tile are out-of-bounds
                    # (unspecified data): select them to the loss target so
                    # they contribute exactly zero.
                    mask = lax.broadcasted_iota(
                        jnp.int32, (tile_rows, _LANES), 0) < edge_rows
                    f = f_ref[...].astype(jnp.float32)
                    r = r_ref[...].astype(jnp.float32)
                    _accum(jnp.where(mask, f, 1.0),
                           jnp.where(mask, f, 0.0),
                           jnp.where(mask, r, 1.0))
            # Tiles with t >= nt (odd tile count split across two cores) fall
            # through with no accumulation.

    return kernel


def _layer_sums(fake_x, real_x, max_tile_rows=None):
    """Fused Pallas reduction over one layer.

    Returns (sum((fake-1)^2), sum(fake^2), sum((real-1)^2)) as f32 scalars.
    """
    n_f = fake_x.size
    n_r = real_x.size
    rows = max(_cdiv(n_f, _LANES), _cdiv(n_r, _LANES))

    f_flat = fake_x.reshape(-1)
    r_flat = real_x.reshape(-1)
    pad_f = rows * _LANES - n_f
    pad_r = rows * _LANES - n_r
    if pad_f:
        # TODO(synk): avoid this copy with a manual-DMA 1-D tail path; it only
        # triggers when numel % 128 != 0 (or real/fake shapes differ).
        f_flat = jnp.pad(f_flat, (0, pad_f), constant_values=1)
    if pad_r:
        r_flat = jnp.pad(r_flat, (0, pad_r), constant_values=1)
    f2d = f_flat.reshape(rows, _LANES)
    r2d = r_flat.reshape(rows, _LANES)

    # Tile size: largest multiple-of-8 row tile keeping two double-buffered
    # input streams within a 32 MiB scoped-VMEM budget (8192 rows for f32,
    # 16384 for bf16).
    itemsize = max(f2d.dtype.itemsize, r2d.dtype.itemsize)
    cap = max_tile_rows if max_tile_rows is not None else (8192 * 4) // itemsize
    tile_rows = rows if rows <= cap else cap

    nt = _cdiv(rows, tile_rows)
    num_cores = 2 if nt >= 2 else 1          # v7x: split tiles across both TCs
    inner = _cdiv(nt, num_cores)
    has_oob = num_cores * inner > nt
    edge_rows = rows - (nt - 1) * tile_rows
    has_edge = edge_rows != tile_rows

    if has_oob:
        in_map = lambda p, j: (jnp.minimum(p * inner + j, nt - 1), 0)
    else:
        in_map = lambda p, j: (p * inner + j, 0)

    bytes_accessed = (f2d.size * f2d.dtype.itemsize
                      + r2d.size * r2d.dtype.itemsize
                      + num_cores * 3 * _LANES * 4)

    out = pl.pallas_call(
        _make_kernel(nt, inner, tile_rows, edge_rows, has_edge, has_oob),
        grid=(num_cores, inner),
        in_specs=[
            pl.BlockSpec((tile_rows, _LANES), in_map),   # fake tile
            pl.BlockSpec((tile_rows, _LANES), in_map),   # real tile
        ],
        out_specs=pl.BlockSpec((1, 3, _LANES), lambda p, j: (p, 0, 0)),
        out_shape=jax.ShapeDtypeStruct((num_cores, 3, _LANES), jnp.float32),
        compiler_params=pltpu.CompilerParams(
            dimension_semantics=("parallel", "arbitrary"),
            vmem_limit_bytes=32 * 1024 * 1024),
        cost_estimate=pl.CostEstimate(
            flops=5 * f2d.size + 3 * r2d.size,
            transcendentals=0,
            bytes_accessed=bytes_accessed),
    )(f2d, r2d)

    sums = jnp.sum(out, axis=(0, 2))          # (3,) over cores and lanes
    # Exact correction for the 1.0-valued tail padding (only affects sum f^2).
    f2_sum = sums[1] - jnp.float32(pad_f)
    return sums[0], f2_sum, sums[2]


def lsgan_loss(real, fake, max_tile_rows=None):
    """LSGAN loss.  real, fake: equal-length lists of arrays (e.g. NCHW).

    Returns (loss_G, loss_D) matching the PyTorch module.
    """
    assert len(real) == len(fake) and len(fake) > 0
    loss_G = jnp.float32(0.0)
    loss_D = jnp.float32(0.0)
    for r_i, f_i in zip(real, fake):
        g_sum, f2_sum, r_sum = _layer_sums(f_i, r_i, max_tile_rows)
        loss_G = loss_G + g_sum / float(f_i.size)
        loss_D = loss_D + 0.5 * (f2_sum / float(f_i.size)
                                 + r_sum / float(r_i.size))
    return loss_G, loss_D


def _reference(real, fake):
    lg = jnp.float32(0.0)
    ld = jnp.float32(0.0)
    for r_i, f_i in zip(real, fake):
        f = f_i.astype(jnp.float32)
        r = r_i.astype(jnp.float32)
        lg = lg + jnp.mean((f - 1.0) ** 2)
        ld = ld + 0.5 * (jnp.mean(f * f) + jnp.mean((r - 1.0) ** 2))
    return lg, ld


if __name__ == "__main__":
    key = jax.random.PRNGKey(0)

    # Multi-scale discriminator outputs (layer=3), NCHW.
    shapes = [(2, 4, 16, 16), (2, 4, 8, 8), (2, 4, 4, 4)]
    real, fake = [], []
    for s in shapes:
        key, k1, k2 = jax.random.split(key, 3)
        real.append(jax.random.normal(k1, s, dtype=jnp.float32))
        fake.append(jax.random.normal(k2, s, dtype=jnp.float32))

    loss_G, loss_D = lsgan_loss(real, fake)
    jax.block_until_ready((loss_G, loss_D))
    ref_G, ref_D = _reference(real, fake)
    assert jnp.allclose(loss_G, ref_G, rtol=1e-5, atol=1e-5), (loss_G, ref_G)
    assert jnp.allclose(loss_D, ref_D, rtol=1e-5, atol=1e-5), (loss_D, ref_D)

    # Exercise the multi-tile grid, dual-core split, out-of-range tile skip,
    # partial-edge-row masking and the non-multiple-of-128 tail-pad path by
    # forcing a tiny tile size.
    shapes2 = [(2, 4, 8, 46), (2, 3, 7, 5), (2, 4, 6, 16)]
    real2, fake2 = [], []
    for s in shapes2:
        key, k1, k2 = jax.random.split(key, 3)
        real2.append(jax.random.normal(k1, s, dtype=jnp.float32))
        fake2.append(jax.random.normal(k2, s, dtype=jnp.float32))
    g2, d2 = lsgan_loss(real2, fake2, max_tile_rows=8)
    rg2, rd2 = _reference(real2, fake2)
    assert jnp.allclose(g2, rg2, rtol=1e-5, atol=1e-5), (g2, rg2)
    assert jnp.allclose(d2, rd2, rtol=1e-5, atol=1e-5), (d2, rd2)

    # bf16 inputs stay bf16 in HBM; the kernel upcasts per tile.
    key, k1, k2 = jax.random.split(key, 3)
    real3 = [jax.random.normal(k1, (2, 4, 16, 16), dtype=jnp.bfloat16)]
    fake3 = [jax.random.normal(k2, (2, 4, 16, 16), dtype=jnp.bfloat16)]
    g3, d3 = lsgan_loss(real3, fake3)
    rg3, rd3 = _reference(real3, fake3)
    assert jnp.allclose(g3, rg3, rtol=1e-4, atol=1e-4), (g3, rg3)
    assert jnp.allclose(d3, rd3, rtol=1e-4, atol=1e-4), (d3, rd3)

    print("KERNEL_OK")
</pallas_src>

<mosaic_0001>
module attributes {stable_mosaic.version = 11 : i64} {
  func.func @kernel(%arg0: i32, %arg1: i32, %arg2: memref<16x128xf32, #tpu.memory_space<vmem>>, %arg3: memref<16x128xf32, #tpu.memory_space<vmem>>, %arg4: memref<1x3x128xf32, #tpu.memory_space<vmem>>) attributes {dimension_semantics = [#tpu.dimension_semantics<parallel>, #tpu.dimension_semantics<arbitrary>], iteration_bounds = array<i64: 1, 1>, scalar_prefetch = 0 : i64, scratch_operands = 0 : i64, tpu.core_type = #tpu.core_type<tc>, window_params = [{transform_indices = @transform_0, window_bounds = array<i64: 16, 128>}, {transform_indices = @transform_1, window_bounds = array<i64: 16, 128>}, {transform_indices = @transform_2, window_bounds = array<i64: 1, 3, 128>}]} {
    %c0_i32 = arith.constant 0 : i32
    %0 = arith.cmpi eq, %arg1, %c0_i32 : i32
    %1 = arith.extui %0 : i1 to i32
    %c0_i32_0 = arith.constant 0 : i32
    %2 = arith.cmpi ne, %1, %c0_i32_0 : i32
    scf.if %2 {
      %cst_14 = arith.constant 0.000000e+00 : f32
      %23 = vector.broadcast %cst_14 : f32 to vector<1x3x128xf32>
      %c0_15 = arith.constant 0 : index
      %c0_16 = arith.constant 0 : index
      %c0_17 = arith.constant 0 : index
      %24 = vector.load %arg4[%c0_15, %c0_16, %c0_17] : memref<1x3x128xf32, #tpu.memory_space<vmem>>, vector<1x3x128xf32>
      tpu.vector_store %arg4[%c0_15, %c0_16, %c0_17], %23 {strides = array<i32>} : memref<1x3x128xf32, #tpu.memory_space<vmem>>, vector<1x3x128xf32>,
    } else {
    }
    %c0 = arith.constant 0 : index
    %c0_1 = arith.constant 0 : index
    %3 = vector.load %arg2[%c0, %c0_1] : memref<16x128xf32, #tpu.memory_space<vmem>>, vector<16x128xf32>
    %c0_2 = arith.constant 0 : index
    %c0_3 = arith.constant 0 : index
    %4 = vector.load %arg3[%c0_2, %c0_3] : memref<16x128xf32, #tpu.memory_space<vmem>>, vector<16x128xf32>
    %cst = arith.constant 1.000000e+00 : f32
    %5 = vector.broadcast %cst : f32 to vector<16x128xf32>
    %6 = arith.subf %3, %5 : vector<16x128xf32>
    %cst_4 = arith.constant 1.000000e+00 : f32
    %7 = vector.broadcast %cst_4 : f32 to vector<16x128xf32>
    %8 = arith.subf %4, %7 : vector<16x128xf32>
    %9 = arith.mulf %6, %6 : vector<16x128xf32>
    %cst_5 = arith.constant dense<0.000000e+00> : vector<128xf32>
    %10 = vector.multi_reduction <add>, %9, %cst_5 [0] : vector<16x128xf32> to vector<128xf32>
    %11 = vector.shape_cast %10 : vector<128xf32> to vector<1x128xf32>
    %12 = arith.mulf %3, %3 : vector<16x128xf32>
    %cst_6 = arith.constant dense<0.000000e+00> : vector<128xf32>
    %13 = vector.multi_reduction <add>, %12, %cst_6 [0] : vector<16x128xf32> to vector<128xf32>
    %14 = vector.shape_cast %13 : vector<128xf32> to vector<1x128xf32>
    %15 = arith.mulf %8, %8 : vector<16x128xf32>
    %cst_7 = arith.constant dense<0.000000e+00> : vector<128xf32>
    %16 = vector.multi_reduction <add>, %15, %cst_7 [0] : vector<16x128xf32> to vector<128xf32>
    %17 = vector.shape_cast %16 : vector<128xf32> to vector<1x128xf32>
    %18 = tpu.concatenate %11, %14, %17 in 0 : vector<1x128xf32>, vector<1x128xf32>, vector<1x128xf32> -> vector<3x128xf32>
    %c0_8 = arith.constant 0 : index
    %c0_9 = arith.constant 0 : index
    %c0_10 = arith.constant 0 : index
    %19 = vector.load %arg4[%c0_8, %c0_9, %c0_10] : memref<1x3x128xf32, #tpu.memory_space<vmem>>, vector<1x3x128xf32>
    %20 = vector.shape_cast %18 : vector<3x128xf32> to vector<1x3x128xf32>
    %21 = arith.addf %19, %20 : vector<1x3x128xf32>
    %c0_11 = arith.constant 0 : index
    %c0_12 = arith.constant 0 : index
    %c0_13 = arith.constant 0 : index
    %22 = vector.load %arg4[%c0_11, %c0_12, %c0_13] : memref<1x3x128xf32, #tpu.memory_space<vmem>>, vector<1x3x128xf32>
    tpu.vector_store %arg4[%c0_11, %c0_12, %c0_13], %21 {strides = array<i32>} : memref<1x3x128xf32, #tpu.memory_space<vmem>>, vector<1x3x128xf32>,
    return
  }
  func.func @transform_0(%arg0: i32, %arg1: i32) -> (i32, i32) {
    %c1_i32 = arith.constant 1 : i32
    %0 = arith.muli %arg0, %c1_i32 : i32
    %1 = arith.addi %0, %arg1 : i32
    %c0_i32 = arith.constant 0 : i32
    %c0_i32_0 = arith.constant 0 : i32
    return %1, %c0_i32 : i32, i32
  }
  func.func @transform_1(%arg0: i32, %arg1: i32) -> (i32, i32) {
    %c1_i32 = arith.constant 1 : i32
    %0 = arith.muli %arg0, %c1_i32 : i32
    %1 = arith.addi %0, %arg1 : i32
    %c0_i32 = arith.constant 0 : i32
    %c0_i32_0 = arith.constant 0 : i32
    return %1, %c0_i32 : i32, i32
  }
  func.func @transform_2(%arg0: i32, %arg1: i32) -> (i32, i32, i32) {
    %c0_i32 = arith.constant 0 : i32
    %c0_i32_0 = arith.constant 0 : i32
    %c0_i32_1 = arith.constant 0 : i32
    return %arg0, %c0_i32, %c0_i32_0 : i32, i32, i32
  }
}

</mosaic_0001>

<llo_original>
// kernel: tpu_custom_call.1
$region0: #{tpu_custom_call.1}
  #allocation0 [shape = 'u32[]', space=smem, size = 0x4, offset = 0x4, fixed_abs, tag = 'smem constant byte address 0x4 - core index']
  #allocation1 [shape = 'u32[144,128]{1,0:T(1,128)}', space=vmem, size = 0x12000, scoped, tag = 'internal scratch']
  %s0 = inlined_call_operand.hbm [shape: f32[16,128], index: 0, kind: input, shape index: {}]
  %s1 = inlined_call_operand.hbm [shape: f32[16,128], index: 1, kind: input, shape index: {}]
  %s2 = inlined_call_operand.vmem [shape: f32[1,3,128], index: 2, kind: output, shape index: {}]
  %s3 = sld [smem:[#allocation0]]
  $region30: #{tpu_custom_call.1} parent=0
    _
  %s5 = ssub.s32 1, %s3
  %s6 = scalar_select 0, %s5, %s3
  $region1: #{tpu_custom_call.1} parent=0
    #allocation2 [shape = 'u8[8192]{0}', space=vmem, size = 0x2000, scoped, tag = 'input window, operand 0, single buffered']
    #allocation3 [shape = 's32[1]{0}', space=sflag, size = 0x4, scoped, tag = 'scoped memory for tpu_custom_call.1']
    #allocation4 [shape = 'u8[8192]{0}', space=vmem, size = 0x2000, scoped, tag = 'input window, operand 1, single buffered']
    #allocation5 [shape = 's32[1]{0}', space=sflag, size = 0x4, scoped, tag = 'scoped memory for tpu_custom_call.1']
    %7 = vsyncpa [#allocation3], 0
    %8 = vsyncpa [#allocation5], 0
    // Predicated region
    $region2: #{tpu_custom_call.1} parent=1 // pred_check
      _
    $region3: #{tpu_custom_call.1} parent=1 // pred_check_branch
      %10 = sbr.rel (0) target = $region5
    $region4: #{tpu_custom_call.1} parent=1 // pred_region
      %s11 = sadd.s32 0, 0
      %s12 = smul.u32 2, %s11
      %s14 = ssub.s32 256, 256
      %15 = vsyncadd [#allocation3], %s14
      %s16 = smul.addr %s12, 128
      %s17 = scalar_lea.hbm %s0, %s16
      %s18 = sshll.u32 [#allocation2], 4
      %s19 = int_to_ptr.vmem [resolvable:$true] %s18
      %24 = dma.hbm_to_vmem [thread:$0]  %s17, 256, %s19, [#allocation3], 128, 128, 8
    $region5: #{tpu_custom_call.1} parent=1 // pred_fallthru
      _
    // Predicated region
    $region6: #{tpu_custom_call.1} parent=1 // pred_check
      _
    $region7: #{tpu_custom_call.1} parent=1 // pred_check_branch
      %26 = sbr.rel (0) target = $region9
    $region8: #{tpu_custom_call.1} parent=1 // pred_region
      %s27 = sadd.s32 0, 0
      %s28 = smul.u32 2, %s27
      %s30 = ssub.s32 256, 256
      %31 = vsyncadd [#allocation5], %s30
      %s32 = smul.addr %s28, 128
      %s33 = scalar_lea.hbm %s1, %s32
      %s34 = sshll.u32 [#allocation4], 4
      %s35 = int_to_ptr.vmem [resolvable:$true] %s34
      %40 = dma.hbm_to_vmem [thread:$0]  %s33, 256, %s35, [#allocation5], 128, 128, 8
    $region9: #{tpu_custom_call.1} parent=1 // pred_fallthru
      _
    // Predicated region
    $region10: #{tpu_custom_call.1} parent=1 // pred_check
      _
    $region11: #{tpu_custom_call.1} parent=1 // pred_check_branch
      %42 = sbr.rel (0) target = $region13
    $region12: #{tpu_custom_call.1} parent=1 // pred_region
      %43 = dma.done [#allocation3], 256
    $region13: #{tpu_custom_call.1} parent=1 // pred_fallthru
      _
    // Predicated region
    $region14: #{tpu_custom_call.1} parent=1 // pred_check
      _
    $region15: #{tpu_custom_call.1} parent=1 // pred_check_branch
      %45 = sbr.rel (0) target = $region17
    $region16: #{tpu_custom_call.1} parent=1 // pred_region
      %46 = dma.done [#allocation5], 256
    $region17: #{tpu_custom_call.1} parent=1 // pred_fallthru
      _
    %s47 = sadd.s32 0, 0
    %s48 = smul.u32 2, %s47
    %s49 = sadd.s32 0, 0
    %s50 = smul.u32 2, %s49
    %p51 = scmp.eq.s32.totalorder 0, 0
    // Predicated region
    $region18: #{tpu_custom_call.1} parent=1 // pred_check
      %p52 = pneg %p51
    $region19: #{tpu_custom_call.1} parent=1 // pred_check_branch
      %54 = sbr.rel (%p52) target = $region21
    $region20: #{tpu_custom_call.1} parent=1 // pred_region
      %55 = vst [vmem:[%s2] sm:$0x7] 0.0
    $region21: #{tpu_custom_call.1} parent=1 // pred_fallthru
      _
    %v56 = vld [vmem:[#allocation2] sm:$0xff]
    %v57 = vld [vmem:[#allocation2 + $0x8] sm:$0xff]
    %v58 = vld [vmem:[#allocation4] sm:$0xff]
    %v59 = vld [vmem:[#allocation4 + $0x8] sm:$0xff]
    %v60 = vsub.f32 %v56, 1.0
    %v61 = vsub.f32 %v57, 1.0
    %v62 = vsub.f32 %v58, 1.0
    %v63 = vsub.f32 %v59, 1.0
    %v64 = vmul.f32 %v60, %v60
    %v65 = vmul.f32 %v61, %v61
    %v66 = vadd.f32 %v64, %v65
    %v67 = vrot.slane %v66, 4
    %v68 = vadd.f32 %v66, %v67
    %v69 = vrot.slane %v68, 2
    %v70 = vadd.f32 %v68, %v69
    %v71 = vrot.slane %v70, 1
    %v72 = vadd.f32 %v70, %v71
    %v73 = vmul.f32 %v56, %v56
    %v74 = vmul.f32 %v57, %v57
    %v75 = vadd.f32 %v73, %v74
    %v76 = vrot.slane %v75, 4
    %v77 = vadd.f32 %v75, %v76
    %v78 = vrot.slane %v77, 2
    %v79 = vadd.f32 %v77, %v78
    %v80 = vrot.slane %v79, 1
    %v81 = vadd.f32 %v79, %v80
    %v82 = vmul.f32 %v62, %v62
    %v83 = vmul.f32 %v63, %v63
    %v84 = vadd.f32 %v82, %v83
    %v85 = vrot.slane %v84, 4
    %v86 = vadd.f32 %v84, %v85
    %v87 = vrot.slane %v86, 2
    %v88 = vadd.f32 %v86, %v87
    %v89 = vrot.slane %v88, 1
    %v90 = vadd.f32 %v88, %v89
    %vm91 = vcmask 1040384
    %v92 = vsel %vm91, %v72, %v81
    %vm93 = vcmask 1041408
    %v94 = vsel %vm93, %v92, %v90
    %v95 = vld [vmem:[%s2] sm:$0x7]
    %v96 = vadd.f32 %v95, %v94
    %97 = vst [vmem:[%s2] sm:$0x7] %v96
    // Predicated region
    $region22: #{tpu_custom_call.1} parent=1 // pred_check
      _
    $region23: #{tpu_custom_call.1} parent=1 // pred_check_branch
      %99 = sbr.rel (0) target = $region25
    $region24: #{tpu_custom_call.1} parent=1 // pred_region
      _
    $region25: #{tpu_custom_call.1} parent=1 // pred_fallthru
      _
    // Predicated region
    $region26: #{tpu_custom_call.1} parent=1 // pred_check
      _
    $region27: #{tpu_custom_call.1} parent=1 // pred_check_branch
      %101 = sbr.rel (0) target = $region29
    $region28: #{tpu_custom_call.1} parent=1 // pred_region
      _
    $region29: #{tpu_custom_call.1} parent=1 // pred_fallthru
      _
    %102 = vsyncpa [#allocation3], 1
    %103 = vsyncpa [#allocation5], 1

</llo_original>
